<compile_context>
chip_gen: v5e
topology: v5e:2x2
jax: 0.10.0
libtpu: 0.0.40
codegen_flags: <defaults>
</compile_context>

<pallas_src>
import jax
import jax.numpy as jnp
from jax.experimental import pallas as pl
from jax.experimental.pallas import tpu as pltpu


def _affine_kernel(w_ref, b_ref, x_ref, o_ref):
    # w_ref, b_ref: (1, 1) f32 scalars in SMEM; x_ref / o_ref: (TM, TN) VMEM tile.
    # Pure VPU fused multiply-add on a full-lane tile (f32 accumulate).
    w = w_ref[0, 0]
    b = b_ref[0, 0]
    o_ref[...] = (x_ref[...].astype(jnp.float32) * w + b).astype(o_ref.dtype)


def _round_up(a, m):
    return ((a + m - 1) // m) * m


def _tile_bytes_for_device():
    # HBM-bound op: bigger tiles amortize the ~0.35 us per-grid-step overhead.
    # v7x (~3.2 TB/s HBM) wants ~4 MiB buffers; 2 MiB is plenty on v5e/v6e and
    # keeps 2x-in + 2x-out pipelined buffers under v5e's 16 MiB scoped VMEM.
    try:
        kind = jax.devices()[0].device_kind.lower()
    except Exception:
        kind = ""
    if "v7" in kind:
        return 4 * 1024 * 1024
    return 2 * 1024 * 1024


def linear_1x1(x, w, b, *, min_pallas_elems=1 << 16):
    """y = Linear(1, 1)(x) = x * w + b for x of shape [N, 1].

    w and b may have any shape with a single element (e.g. (1, 1) and (1,)).
    """
    n, f = x.shape
    assert f == 1, "kernel implements Linear(1, 1) only"
    dtype = x.dtype

    w_s = jnp.asarray(w, jnp.float32).reshape(1, 1)
    b_s = jnp.asarray(b, jnp.float32).reshape(1, 1)

    # ---- small-N fallback: XLA's fused elementwise is strictly faster here ----
    if n < min_pallas_elems:
        y = x.astype(jnp.float32) * w_s[0, 0] + b_s[0, 0]
        return y.astype(dtype)

    itemsize = jnp.dtype(dtype).itemsize
    # Sublane packing: 8 rows for 4-byte, 16 for 2-byte, 32 for 1-byte dtypes.
    sub = 8 * max(1, 4 // itemsize)

    # ---- lane-dense layout: view the N scalars as a [rows, TN] slab ----------
    TN = 1024                                   # lane dim: multiple of 128
    rows = -(-n // TN)                          # cdiv
    rows = _round_up(rows, sub)                 # pad rows to sublane packing only

    # Tile height: ~tile_bytes per buffer, but keep >= 4 grid steps so the
    # "parallel" axis shards across both v7x TensorCores and still pipelines.
    tile_bytes = _tile_bytes_for_device()
    tm_cap = max(sub, (tile_bytes // (TN * itemsize)) // sub * sub)
    steps = max(4, -(-rows // tm_cap))
    TM = _round_up(-(-rows // steps), sub)
    TM = min(TM, rows)
    grid = (-(-rows // TM),)                    # partial trailing block is legal

    padded_len = rows * TN
    flat = x.reshape(-1)                        # contiguous reshape: bitcast
    if padded_len != n:
        flat = jnp.pad(flat, (0, padded_len - n))
    slab = flat.reshape(rows, TN)

    out_slab = pl.pallas_call(
        _affine_kernel,
        out_shape=jax.ShapeDtypeStruct((rows, TN), dtype),
        grid=grid,
        in_specs=[
            pl.BlockSpec(memory_space=pltpu.SMEM),            # w (1,1) f32 scalar
            pl.BlockSpec(memory_space=pltpu.SMEM),            # b (1,1) f32 scalar
            pl.BlockSpec((TM, TN), lambda i: (i, 0)),          # x tile (VMEM)
        ],
        out_specs=pl.BlockSpec((TM, TN), lambda i: (i, 0)),    # y tile (VMEM)
        compiler_params=pltpu.CompilerParams(
            dimension_semantics=("parallel",),
            # Allow XLA to fuse the pad/reshape producer into the kernel's
            # operand read instead of materializing a padded HBM copy.
            allow_input_fusion=[False, False, True],
        ),
    )(w_s, b_s, slab)

    # ---- undo the layout change (no-op slices are removed by XLA) -------------
    out_flat = out_slab.reshape(-1)
    if padded_len != n:
        out_flat = out_flat[:n]
    return out_flat.reshape(n, 1)


if __name__ == "__main__":
    key = jax.random.PRNGKey(0)
    k_w, k_b, k_x1, k_x2, k_x3, k_x4 = jax.random.split(key, 6)

    # PyTorch Linear(1, 1) init: uniform(-1/sqrt(1), 1/sqrt(1)) for weight & bias.
    w = jax.random.uniform(k_w, (1, 1), jnp.float32, minval=-1.0, maxval=1.0)
    b = jax.random.uniform(k_b, (1,), jnp.float32, minval=-1.0, maxval=1.0)

    def ref(x):
        return x * w[0, 0] + b[0]

    # Module-sized small inputs -> plain-JAX fallback path.
    x_small = jax.random.normal(k_x1, (8, 1), jnp.float32)
    y_small = jax.block_until_ready(linear_1x1(x_small, w, b))
    assert y_small.shape == (8, 1)
    assert jnp.allclose(y_small, ref(x_small), atol=1e-6), "mismatch (N=8)"

    x_med = jax.random.normal(k_x2, (1000, 1), jnp.float32)
    y_med = jax.block_until_ready(linear_1x1(x_med, w, b))
    assert y_med.shape == (1000, 1)
    assert jnp.allclose(y_med, ref(x_med), atol=1e-6), "mismatch (N=1000)"

    # Pallas kernel path: lane-aligned size (no pad, no output slice).
    n_big = 1 << 16
    x_big = jax.random.normal(k_x3, (n_big, 1), jnp.float32)
    y_big = jax.block_until_ready(linear_1x1(x_big, w, b))
    assert y_big.shape == (n_big, 1)
    assert jnp.allclose(y_big, ref(x_big), atol=1e-6), "mismatch (N=64K)"

    # Pallas kernel path: ragged size (pad + possible partial trailing block).
    n_rag = 70000
    x_rag = jax.random.normal(k_x4, (n_rag, 1), jnp.float32)
    y_rag = jax.block_until_ready(linear_1x1(x_rag, w, b))
    assert y_rag.shape == (n_rag, 1)
    assert jnp.allclose(y_rag, ref(x_rag), atol=1e-6), "mismatch (N=70000)"

    print("KERNEL_OK")
</pallas_src>

<mosaic_0001>
module attributes {stable_mosaic.version = 11 : i64} {
  func.func @_affine_kernel(%arg0: i32, %arg1: memref<1x1xf32, #tpu.memory_space<smem>>, %arg2: memref<1x1xf32, #tpu.memory_space<smem>>, %arg3: memref<16x1024xf32, #tpu.memory_space<vmem>>, %arg4: memref<16x1024xf32, #tpu.memory_space<vmem>>) attributes {dimension_semantics = [#tpu.dimension_semantics<parallel>], iteration_bounds = array<i64: 4>, scalar_prefetch = 0 : i64, scratch_operands = 0 : i64, tpu.core_type = #tpu.core_type<tc>, window_params = [{transform_indices = @transform_0, window_bounds = array<i64: 1, 1>}, {transform_indices = @transform_1, window_bounds = array<i64: 1, 1>}, {transform_indices = @transform_2, window_bounds = array<i64: 16, 1024>}, {transform_indices = @transform_3, window_bounds = array<i64: 16, 1024>}]} {
    %c0 = arith.constant 0 : index
    %c0_0 = arith.constant 0 : index
    %0 = memref.load %arg1[%c0, %c0_0] : memref<1x1xf32, #tpu.memory_space<smem>>
    %c0_1 = arith.constant 0 : index
    %c0_2 = arith.constant 0 : index
    %1 = memref.load %arg2[%c0_1, %c0_2] : memref<1x1xf32, #tpu.memory_space<smem>>
    %c0_3 = arith.constant 0 : index
    %c0_4 = arith.constant 0 : index
    %2 = vector.load %arg3[%c0_3, %c0_4] : memref<16x1024xf32, #tpu.memory_space<vmem>>, vector<16x1024xf32>
    %3 = vector.broadcast %0 : f32 to vector<16x1024xf32>
    %4 = arith.mulf %2, %3 : vector<16x1024xf32>
    %5 = vector.broadcast %1 : f32 to vector<16x1024xf32>
    %6 = arith.addf %4, %5 : vector<16x1024xf32>
    %c0_5 = arith.constant 0 : index
    %c0_6 = arith.constant 0 : index
    %7 = vector.load %arg4[%c0_5, %c0_6] : memref<16x1024xf32, #tpu.memory_space<vmem>>, vector<16x1024xf32>
    tpu.vector_store %arg4[%c0_5, %c0_6], %6 {strides = array<i32>} : memref<16x1024xf32, #tpu.memory_space<vmem>>, vector<16x1024xf32>,
    return
  }
  func.func @transform_0(%arg0: i32) -> (i32, i32) {
    %c0_i32 = arith.constant 0 : i32
    %c0_i32_0 = arith.constant 0 : i32
    %c0_i32_1 = arith.constant 0 : i32
    return %c0_i32, %c0_i32_0 : i32, i32
  }
  func.func @transform_1(%arg0: i32) -> (i32, i32) {
    %c0_i32 = arith.constant 0 : i32
    %c0_i32_0 = arith.constant 0 : i32
    %c0_i32_1 = arith.constant 0 : i32
    return %c0_i32, %c0_i32_0 : i32, i32
  }
  func.func @transform_2(%arg0: i32) -> (i32, i32) {
    %c0_i32 = arith.constant 0 : i32
    %c0_i32_0 = arith.constant 0 : i32
    return %arg0, %c0_i32 : i32, i32
  }
  func.func @transform_3(%arg0: i32) -> (i32, i32) {
    %c0_i32 = arith.constant 0 : i32
    %c0_i32_0 = arith.constant 0 : i32
    return %arg0, %c0_i32 : i32, i32
  }
}

</mosaic_0001>

<llo_original>
// kernel: tpu_custom_call.1
$region0: #{tpu_custom_call.1}
  #allocation0 [shape = 'u32[]', space=smem, size = 0x4, offset = 0x4, fixed_abs, tag = 'smem constant byte address 0x4 - core index']
  #allocation1 [shape = 'u32[72,128]{1,0:T(1,128)}', space=vmem, size = 0x9000, scoped, tag = 'internal scratch']
  #allocation2 [shape = 'f32[1,1]{1,0:T(1,128)S(6)}', space=smem, size = 0x200, scoped, tag = 'scoped memory for tpu_custom_call.1']
  #allocation3 [shape = 'f32[1,1]{1,0:T(1,128)S(6)}', space=smem, size = 0x200, scoped, tag = 'scoped memory for tpu_custom_call.1']
  %s0 = inlined_call_operand.<no memory space> [shape: f32[1,1], index: 0, kind: input, shape index: {}]
  %s1 = inlined_call_operand.<no memory space> [shape: f32[1,1], index: 1, kind: input, shape index: {}]
  %s2 = inlined_call_operand.hbm [shape: f32[64,1024], index: 2, kind: input, shape index: {}]
  %s3 = inlined_call_operand.hbm [shape: f32[64,1024], index: 3, kind: output, shape index: {}]
  %s4 = sld [smem:[#allocation0]]
  $region49: #{tpu_custom_call.1} parent=0
    _
  %s6 = ssub.s32 1, %s4
  %s7 = scalar_select 0, %s6, %s4
  %8 = sst [smem:[#allocation2]] %s0
  %9 = sst [smem:[#allocation3]] %s1
  $region1: #{tpu_custom_call.1} parent=0
    #allocation4 [shape = 'u8[131072]{0}', space=vmem, size = 0x20000, scoped, tag = 'input window, operand 2']
    #allocation5 [shape = 's32[2]{0}', space=sflag, size = 0x8, scoped, tag = 'scoped memory for tpu_custom_call.1']
    #allocation6 [shape = 's32[2]{0}', space=sflag, size = 0x8, scoped, tag = 'scoped memory for tpu_custom_call.1']
    #allocation7 [shape = 'u8[131072]{0}', space=vmem, size = 0x20000, scoped, tag = 'output window, operand 0']
    %10 = vsyncpa [#allocation5], 0
    %s11 = scalar_lea.sflag [#allocation5], 1
    %12 = vsyncpa %s11, 0
    %13 = vsyncpa [#allocation6], 0
    %s14 = scalar_lea.sflag [#allocation6], 1
    %15 = vsyncpa %s14, 0
    loop: start=0, step=1, limit=6
    $region2: #{tpu_custom_call.1} parent=1 // loop_pre_header
      _
    $region3: #{tpu_custom_call.1} parent=1 // loop_header
      %s17 = sphi 0, %s21
      %p18 = scmp.ge.s32.totalorder %s17, 6
      %s25 = sphi 0, %s25
      %s27 = sphi 0, %s25
      %s28 = sphi 0, %s27
      %s42 = sphi 0, %s28
      %s46 = sphi 0, %s46
      %s48 = sphi 0, %s46
      %s49 = sphi 0, %s48
      %s63 = sphi 0, %s49
      %s69 = sphi 0, %s71
      %s72 = sphi 0, %s69
      %s73 = sphi 0, %s72
      %s89 = sphi 0, %s73
      %s95 = sphi 0, %s97
      %s98 = sphi 0, %s95
      %s99 = sphi 0, %s98
      %s115 = sphi 0, %s99
    $region4: #{tpu_custom_call.1} parent=1 // loop_header_branch
      %20 = sbr.rel (%p18) target = $region8
    $region5: #{tpu_custom_call.1} parent=1 // loop_body
      %s22 = ssub.s32 %s17, 1
      %s23 = ssub.s32 %s17, 2
      %s24 = sadd.s32 %s17, 1
      %s26 = sadd.s32 %s25, 1
      %p29 = scmp.eq.s32.totalorder %s17, 3
      %p30 = scmp.ne.s32.totalorder %s25, %s27
      %p31 = scmp.eq.s32.totalorder %s17, 0
      %p32 = por %p30, %p31
      %p33 = scmp.ne.s32.totalorder %s25, %s27
      %p34 = scmp.eq.s32.totalorder %s22, 3
      %p35 = por %p33, %p34
      %p36 = scmp.ne.s32.totalorder %s27, %s28
      %p37 = scmp.eq.s32.totalorder %s22, 0
      %p38 = por %p36, %p37
      %p39 = scmp.ne.s32.totalorder %s27, %s28
      %p40 = scmp.eq.s32.totalorder %s23, 3
      %p41 = por %p39, %p40
      %p43 = scmp.ne.s32.totalorder %s28, %s42
      %p44 = scmp.eq.s32.totalorder %s23, 0
      %p45 = por %p43, %p44
      %s47 = sadd.s32 %s46, 1
      %p50 = scmp.eq.s32.totalorder %s17, 3
      %p51 = scmp.ne.s32.totalorder %s46, %s48
      %p52 = scmp.eq.s32.totalorder %s17, 0
      %p53 = por %p51, %p52
      %p54 = scmp.ne.s32.totalorder %s46, %s48
      %p55 = scmp.eq.s32.totalorder %s22, 3
      %p56 = por %p54, %p55
      %p57 = scmp.ne.s32.totalorder %s48, %s49
      %p58 = scmp.eq.s32.totalorder %s22, 0
      %p59 = por %p57, %p58
      %p60 = scmp.ne.s32.totalorder %s48, %s49
      %p61 = scmp.eq.s32.totalorder %s23, 3
      %p62 = por %p60, %p61
      %p64 = scmp.ne.s32.totalorder %s49, %s63
      %p65 = scmp.eq.s32.totalorder %s23, 0
      %p66 = por %p64, %p65
      %s67 = ssub.s32 %s17, %s24
      %p68 = scmp.eq.s32.totalorder %s67, 0
      %s70 = sadd.s32 %s69, 1
      %s71 = scalar_select %p68, %s69, %s70
      %p74 = pneg %p68
      %p75 = scmp.eq.s32.totalorder %s17, 3
      %p76 = por %p74, %p75
      %p77 = scmp.ne.s32.totalorder %s69, %s72
      %p78 = scmp.eq.s32.totalorder %s17, 0
      %p79 = por %p77, %p78
      %p80 = scmp.ne.s32.totalorder %s69, %s72
      %p81 = scmp.eq.s32.totalorder %s22, 3
      %p82 = por %p80, %p81
      %p83 = scmp.ne.s32.totalorder %s72, %s73
      %p84 = scmp.eq.s32.totalorder %s22, 0
      %p85 = por %p83, %p84
      %p86 = scmp.ne.s32.totalorder %s72, %s73
      %p87 = scmp.eq.s32.totalorder %s23, 3
      %p88 = por %p86, %p87
      %p90 = scmp.ne.s32.totalorder %s73, %s89
      %p91 = scmp.eq.s32.totalorder %s23, 0
      %p92 = por %p90, %p91
      %s93 = ssub.s32 %s17, %s24
      %p94 = scmp.eq.s32.totalorder %s93, 0
      %s96 = sadd.s32 %s95, 1
      %s97 = scalar_select %p94, %s95, %s96
      %p100 = pneg %p94
      %p101 = scmp.eq.s32.totalorder %s17, 3
      %p102 = por %p100, %p101
      %p103 = scmp.ne.s32.totalorder %s95, %s98
      %p104 = scmp.eq.s32.totalorder %s17, 0
      %p105 = por %p103, %p104
      %p106 = scmp.ne.s32.totalorder %s95, %s98
      %p107 = scmp.eq.s32.totalorder %s22, 3
      %p108 = por %p106, %p107
      %p109 = scmp.ne.s32.totalorder %s98, %s99
      %p110 = scmp.eq.s32.totalorder %s22, 0
      %p111 = por %p109, %p110
      %p112 = scmp.ne.s32.totalorder %s98, %s99
      %p113 = scmp.eq.s32.totalorder %s23, 3
      %p114 = por %p112, %p113
      %p116 = scmp.ne.s32.totalorder %s99, %s115
      %p117 = scmp.eq.s32.totalorder %s23, 0
      %p118 = por %p116, %p117
      %p119 = scmp.le.s32.totalorder 1, %s17
      %p120 = scmp.lt.s32.totalorder %s17, 5
      %p121 = pnand %p119, %p120
      %p122 = pneg %p121
      // Predicated region
      $region9: #{tpu_custom_call.1} parent=5 // pred_check
        _
      $region10: #{tpu_custom_call.1} parent=5 // pred_check_branch
        %124 = sbr.rel (%p121) target = $region12
      $region11: #{tpu_custom_call.1} parent=5 // pred_region
        %s125 = ssub.s32 %s17, 1
        // Predicated region
        $region13: #{tpu_custom_call.1} parent=11 // pred_check
          %p126 = pneg %p38
        $region14: #{tpu_custom_call.1} parent=11 // pred_check_branch
          %128 = sbr.rel (%p126) target = $region16
        $region15: #{tpu_custom_call.1} parent=11 // pred_region
          _
        $region16: #{tpu_custom_call.1} parent=11 // pred_fallthru
          _
        // Predicated region
        $region17: #{tpu_custom_call.1} parent=11 // pred_check
          %p129 = pneg %p59
        $region18: #{tpu_custom_call.1} parent=11 // pred_check_branch
          %131 = sbr.rel (%p129) target = $region20
        $region19: #{tpu_custom_call.1} parent=11 // pred_region
          _
        $region20: #{tpu_custom_call.1} parent=11 // pred_fallthru
          _
      $region12: #{tpu_custom_call.1} parent=5 // pred_fallthru
        _
      %p132 = scmp.lt.s32.totalorder %s17, 4
      // Predicated region
      $region21: #{tpu_custom_call.1} parent=5 // pred_check
        %p133 = pneg %p132
      $region22: #{tpu_custom_call.1} parent=5 // pred_check_branch
        %135 = sbr.rel (%p133) target = $region24
      $region23: #{tpu_custom_call.1} parent=5 // pred_region
        // Predicated region
        $region25: #{tpu_custom_call.1} parent=23 // pred_check
          %p136 = pneg %p79
        $region26: #{tpu_custom_call.1} parent=23 // pred_check_branch
          %138 = sbr.rel (%p136) target = $region28
        $region27: #{tpu_custom_call.1} parent=23 // pred_region
          %s139 = sand.u32 %s69, 1
          %s140 = scalar_lea.sflag [#allocation5], %s139
          %s141 = sand.u32 %s69, 1
          %s142 = smul.addr %s141, 128
          %s143 = scalar_lea.vmem [#allocation4], %s142
          %s144 = smul.u32 2, %s17
          %146 = vsyncadd %s140, 0
          %s147 = smul.addr %s144, 8
          %s148 = smul.addr %s147, 8
          %s149 = scalar_lea.hbm %s2, %s148
          %s150 = sshll.u32 %s149, 4
          %s151 = int_to_ptr.hbm [resolvable:$true] %s150
          %s152 = sshll.u32 %s143, 4
          %s153 = int_to_ptr.vmem [resolvable:$true] %s152
          %158 = dma.hbm_to_vmem [thread:$0]  %s151, 2048, %s153, %s140, 1024, 1024, 64
        $region28: #{tpu_custom_call.1} parent=23 // pred_fallthru
          _
      $region24: #{tpu_custom_call.1} parent=5 // pred_fallthru
        _
      %p159 = scmp.le.s32.totalorder 1, %s17
      %p160 = scmp.lt.s32.totalorder %s17, 5
      %p161 = pnand %p159, %p160
      %p162 = pneg %p161
      // Predicated region
      $region29: #{tpu_custom_call.1} parent=5 // pred_check
        _
      $region30: #{tpu_custom_call.1} parent=5 // pred_check_branch
        %164 = sbr.rel (%p161) target = $region32
      $region31: #{tpu_custom_call.1} parent=5 // pred_region
        %s165 = ssub.s32 %s17, 1
        %s166 = sand.u32 %s72, 1
        %s167 = scalar_lea.sflag [#allocation5], %s166
        %s168 = sand.u32 %s72, 1
        %s169 = smul.addr %s168, 128
        %s170 = scalar_lea.vmem [#allocation4], %s169
        // Predicated region
        $region33: #{tpu_custom_call.1} parent=31 // pred_check
          %p171 = pneg %p85
        $region34: #{tpu_custom_call.1} parent=31 // pred_check_branch
          %173 = sbr.rel (%p171) target = $region36
        $region35: #{tpu_custom_call.1} parent=31 // pred_region
          %175 = dma.done %s167, 2048
        $region36: #{tpu_custom_call.1} parent=31 // pred_fallthru
          _
        %p176 = pneg %p38
        %p177 = pneg %p35
        %p178 = pneg %p59
        %p179 = pneg %p56
        %s180 = sand.u32 %s72, 1
        %s181 = scalar_lea.sflag [#allocation5], %s180
        %s182 = sand.u32 %s72, 1
        %s183 = smul.addr %s182, 128
        %s184 = scalar_lea.vmem [#allocation4], %s183
        %p185 = pneg %p85
        %p186 = pneg %p82
        %p187 = pneg %p111
        %p188 = pneg %p108
        %s189 = sand.u32 %s98, 1
        %s190 = scalar_lea.sflag [#allocation6], %s189
        %s191 = sand.u32 %s98, 1
        %s192 = smul.addr %s191, 128
        %s193 = scalar_lea.vmem [#allocation7], %s192
        %s194 = smul.u32 2, %s22
        %s195 = smul.u32 2, %s22
        %s196 = sld [smem:[#allocation2]]
        %s197 = sld [smem:[#allocation3]]
        %v198 = vld [vmem:[%s170] sm:$0xff]
        %v199 = vld [vmem:[%s170 + $0x8] sm:$0xff]
        %v200 = vld [vmem:[%s170 + $0x10] sm:$0xff]
        %v201 = vld [vmem:[%s170 + $0x18] sm:$0xff]
        %v202 = vld [vmem:[%s170 + $0x20] sm:$0xff]
        %v203 = vld [vmem:[%s170 + $0x28] sm:$0xff]
        %v204 = vld [vmem:[%s170 + $0x30] sm:$0xff]
        %v205 = vld [vmem:[%s170 + $0x38] sm:$0xff]
        %v206 = vld [vmem:[%s170 + $0x40] sm:$0xff]
        %v207 = vld [vmem:[%s170 + $0x48] sm:$0xff]
        %v208 = vld [vmem:[%s170 + $0x50] sm:$0xff]
        %v209 = vld [vmem:[%s170 + $0x58] sm:$0xff]
        %v210 = vld [vmem:[%s170 + $0x60] sm:$0xff]
        %v211 = vld [vmem:[%s170 + $0x68] sm:$0xff]
        %v212 = vld [vmem:[%s170 + $0x70] sm:$0xff]
        %v213 = vld [vmem:[%s170 + $0x78] sm:$0xff]
        %v214 = vstv %s196
        %v215 = vmul.f32 %v198, %v214
        %v216 = vmul.f32 %v199, %v214
        %v217 = vmul.f32 %v200, %v214
        %v218 = vmul.f32 %v201, %v214
        %v219 = vmul.f32 %v202, %v214
        %v220 = vmul.f32 %v203, %v214
        %v221 = vmul.f32 %v204, %v214
        %v222 = vmul.f32 %v205, %v214
        %v223 = vmul.f32 %v206, %v214
        %v224 = vmul.f32 %v207, %v214
        %v225 = vmul.f32 %v208, %v214
        %v226 = vmul.f32 %v209, %v214
        %v227 = vmul.f32 %v210, %v214
        %v228 = vmul.f32 %v211, %v214
        %v229 = vmul.f32 %v212, %v214
        %v230 = vmul.f32 %v213, %v214
        %v231 = vstv %s197
        %v232 = vadd.f32 %v215, %v231
        %v233 = vadd.f32 %v216, %v231
        %v234 = vadd.f32 %v217, %v231
        %v235 = vadd.f32 %v218, %v231
        %v236 = vadd.f32 %v219, %v231
        %v237 = vadd.f32 %v220, %v231
        %v238 = vadd.f32 %v221, %v231
        %v239 = vadd.f32 %v222, %v231
        %v240 = vadd.f32 %v223, %v231
        %v241 = vadd.f32 %v224, %v231
        %v242 = vadd.f32 %v225, %v231
        %v243 = vadd.f32 %v226, %v231
        %v244 = vadd.f32 %v227, %v231
        %v245 = vadd.f32 %v228, %v231
        %v246 = vadd.f32 %v229, %v231
        %v247 = vadd.f32 %v230, %v231
        %248 = vst [vmem:[%s193] sm:$0xff] %v232
        %249 = vst [vmem:[%s193 + $0x8] sm:$0xff] %v233
        %250 = vst [vmem:[%s193 + $0x10] sm:$0xff] %v234
        %251 = vst [vmem:[%s193 + $0x18] sm:$0xff] %v235
        %252 = vst [vmem:[%s193 + $0x20] sm:$0xff] %v236
        %253 = vst [vmem:[%s193 + $0x28] sm:$0xff] %v237
        %254 = vst [vmem:[%s193 + $0x30] sm:$0xff] %v238
        %255 = vst [vmem:[%s193 + $0x38] sm:$0xff] %v239
        %256 = vst [vmem:[%s193 + $0x40] sm:$0xff] %v240
        %257 = vst [vmem:[%s193 + $0x48] sm:$0xff] %v241
        %258 = vst [vmem:[%s193 + $0x50] sm:$0xff] %v242
        %259 = vst [vmem:[%s193 + $0x58] sm:$0xff] %v243
        %260 = vst [vmem:[%s193 + $0x60] sm:$0xff] %v244
        %261 = vst [vmem:[%s193 + $0x68] sm:$0xff] %v245
        %262 = vst [vmem:[%s193 + $0x70] sm:$0xff] %v246
        %263 = vst [vmem:[%s193 + $0x78] sm:$0xff] %v247
        %s264 = sand.u32 %s98, 1
        %s265 = scalar_lea.sflag [#allocation6], %s264
        %s266 = sand.u32 %s98, 1
        %s267 = smul.addr %s266, 128
        %s268 = scalar_lea.vmem [#allocation7], %s267
        // Predicated region
        $region37: #{tpu_custom_call.1} parent=31 // pred_check
          %p269 = pneg %p108
        $region38: #{tpu_custom_call.1} parent=31 // pred_check_branch
          %271 = sbr.rel (%p269) target = $region40
        $region39: #{tpu_custom_call.1} parent=31 // pred_region
          %s272 = smul.u32 2, %s22
          %274 = vsyncadd %s265, 0
          %s275 = smul.addr %s272, 8
          %s276 = smul.addr %s275, 8
          %s277 = scalar_lea.hbm %s3, %s276
          %s278 = sshll.u32 %s268, 4
          %s279 = int_to_ptr.vmem [resolvable:$true] %s278
          %s280 = sshll.u32 %s277, 4
          %s281 = int_to_ptr.hbm [resolvable:$true] %s280
          %286 = dma.vmem_to_hbm [thread:$0]  %s279, 2048, %s281, %s265, 1024, 1024, 64
        $region40: #{tpu_custom_call.1} parent=31 // pred_fallthru
          _
      $region32: #{tpu_custom_call.1} parent=5 // pred_fallthru
        _
      %p287 = scmp.le.s32.totalorder 2, %s17
      // Predicated region
      $region41: #{tpu_custom_call.1} parent=5 // pred_check
        %p288 = pneg %p287
      $region42: #{tpu_custom_call.1} parent=5 // pred_check_branch
        %290 = sbr.rel (%p288) target = $region44
      $region43: #{tpu_custom_call.1} parent=5 // pred_region
        %s291 = ssub.s32 %s17, 2
        // Predicated region
        $region45: #{tpu_custom_call.1} parent=43 // pred_check
          %p292 = pneg %p114
        $region46: #{tpu_custom_call.1} parent=43 // pred_check_branch
          %294 = sbr.rel (%p292) target = $region48
        $region47: #{tpu_custom_call.1} parent=43 // pred_region
          %s295 = sand.u32 %s99, 1
          %s296 = scalar_lea.sflag [#allocation6], %s295
          %s297 = sand.u32 %s99, 1
          %s298 = smul.addr %s297, 128
          %s299 = scalar_lea.vmem [#allocation7], %s298
          %301 = dma.done %s296, 2048
        $region48: #{tpu_custom_call.1} parent=43 // pred_fallthru
          _
      $region44: #{tpu_custom_call.1} parent=5 // pred_fallthru
        _
    $region6: #{tpu_custom_call.1} parent=1 // loop_footer
      %s21 = sadd.s32 1, %s17
    $region7: #{tpu_custom_call.1} parent=1 // loop_footer_branch
      %16 = sbr.rel target = $region3
    $region8: #{tpu_custom_call.1} parent=1 // loop_exit
      _
    %302 = vsyncpa [#allocation5], 1
    %s303 = scalar_lea.sflag [#allocation5], 1
    %304 = vsyncpa %s303, 1
    %305 = vsyncpa [#allocation6], 1
    %s306 = scalar_lea.sflag [#allocation6], 1
    %307 = vsyncpa %s306, 1

</llo_original>
